<compile_context>
chip_gen: v7x
topology: tpu7x:2x2x1
jax: 0.10.0
libtpu: 0.0.40
codegen_flags: <defaults>
</compile_context>

<pallas_src>
import functools

import jax
import jax.numpy as jnp
import numpy as np
from jax.experimental import pallas as pl
from jax.experimental.pallas import tpu as pltpu


def _project3d_kernel(p_ref, pts_ref, out_ref, *, B, eps, sx, sy):
    """One lane-tile step over all batches.

    p_ref   : (B*12,)        SMEM  flattened P matrices (b-major, row, col)
    pts_ref : (B*4, TN)      VMEM  homogeneous points, batch folded into rows
    out_ref : (B*2, TN)      VMEM  normalized pixel coords (x row, y row per batch)
    """
    for b in range(B):            # unrolled Python loop: static indices only
        pbase = b * 12
        rbase = b * 4

        def cam_row(r, _pbase=pbase, _rbase=rbase):
            # scalar * vector FMAs on the VPU: (1, TN)
            acc = p_ref[_pbase + r * 4 + 0] * pts_ref[_rbase + 0:_rbase + 1, :]
            for k in range(1, 4):
                acc = acc + p_ref[_pbase + r * 4 + k] * pts_ref[_rbase + k:_rbase + k + 1, :]
            return acc

        cam_x = cam_row(0)
        cam_y = cam_row(1)
        cam_z = cam_row(2)

        z = cam_z + eps
        # EUP approx reciprocal (own VLIW slot) + one Newton step -> ~f32 accuracy.
        inv_z = pl.reciprocal(z, approx=True)
        inv_z = inv_z * (2.0 - z * inv_z)

        # Folded normalization: ((x/z)/(W-1) - 0.5) * 2  ==  x*inv_z*sx - 1
        out_ref[b * 2 + 0:b * 2 + 1, :] = cam_x * inv_z * sx - 1.0
        out_ref[b * 2 + 1:b * 2 + 2, :] = cam_y * inv_z * sy - 1.0


def _choose_tiling(HW, B):
    """Pick (lane_tile, n_steps) maximizing DMA size within a VMEM budget."""
    # double-buffered f32 footprint per lane-column: (B*4 in + B*2 out) * 4 B * 2 bufs
    bytes_per_lane = B * 6 * 4 * 2
    vmem_budget = 16 * 1024 * 1024          # comfortable on v5e/v6e/v7x scoped defaults
    max_tile = max(128, (vmem_budget // bytes_per_lane) // 128 * 128)

    n_steps = max(1, -(-HW // max_tile))    # ceil
    if n_steps == 1 and HW > 128:
        n_steps = 2                         # keep both v7x TensorCores busy
    tile = -(-HW // n_steps)                # ceil
    tile = ((tile + 127) // 128) * 128      # lane-dense (multiple of 128)
    return tile, n_steps


def project3d(points, K, T, *, height, width, eps=1e-7):
    """Pallas equivalent of Project3D.forward(points, K, T) -> (B, H, W, 2)."""
    B, four, HW = points.shape
    assert four == 4 and HW == height * width

    # Glue: tiny per-batch 4x4 matmul, keep rows 0..2, flatten for SMEM.
    P = jnp.matmul(K, T)[:, :3, :].astype(jnp.float32).reshape(B * 12)   # (B*12,)

    tile, n_steps = _choose_tiling(HW, B)
    HW_pad = tile * n_steps

    pts = points.astype(jnp.float32)
    if HW_pad != HW:
        pts = jnp.pad(pts, ((0, 0), (0, 0), (0, HW_pad - HW)))
    pts = pts.reshape(B * 4, HW_pad)        # fold batch into the sublane axis

    kernel = functools.partial(
        _project3d_kernel,
        B=B,
        eps=float(eps),
        sx=float(2.0 / (width - 1.0)),
        sy=float(2.0 / (height - 1.0)),
    )

    out = pl.pallas_call(
        kernel,
        out_shape=jax.ShapeDtypeStruct((B * 2, HW_pad), jnp.float32),
        grid_spec=pltpu.PrefetchScalarGridSpec(
            num_scalar_prefetch=0,
            grid=(n_steps,),
            in_specs=[
                # Flat P scalars in SMEM (no sublane/lane padding).
                pl.BlockSpec(memory_space=pltpu.MemorySpace.SMEM),
                # All batches' homogeneous rows, one big lane tile of HW.
                pl.BlockSpec((B * 4, tile), lambda j: (0, j)),
            ],
            out_specs=pl.BlockSpec((B * 2, tile), lambda j: (0, j)),
        ),
        compiler_params=pltpu.CompilerParams(dimension_semantics=("parallel",)),
    )(P, pts)

    # Glue: (B*2, HW_pad) -> (B, 2, H, W) -> (B, H, W, 2), matching the torch permute.
    pix = out[:, :HW].reshape(B, 2, height, width).transpose(0, 2, 3, 1)
    return pix


def _reference(points, K, T, *, height, width, eps=1e-7):
    """Pure-JAX reference mirroring the PyTorch forward exactly."""
    B = points.shape[0]
    P = jnp.matmul(K, T)[:, :3, :]
    cam = jnp.matmul(P, points)                              # (B, 3, HW)
    pix = cam[:, :2, :] / (cam[:, 2:3, :] + eps)             # (B, 2, HW)
    pix = pix.reshape(B, 2, height, width).transpose(0, 2, 3, 1)
    pix = pix.at[..., 0].divide(width - 1)
    pix = pix.at[..., 1].divide(height - 1)
    return (pix - 0.5) * 2


if __name__ == "__main__":
    B, H, W = 2, 16, 16
    HW = H * W
    key = jax.random.PRNGKey(0)
    k1, k2, k3, k4 = jax.random.split(key, 4)

    # Homogeneous 3D points: x,y in [-1,1], z in [1,2], w = 1 (keeps depth positive).
    xy = jax.random.uniform(k1, (B, 2, HW), minval=-1.0, maxval=1.0)
    z = jax.random.uniform(k2, (B, 1, HW), minval=1.0, maxval=2.0)
    ones = jnp.ones((B, 1, HW), jnp.float32)
    points = jnp.concatenate([xy, z, ones], axis=1).astype(jnp.float32)  # (B,4,HW)

    # Camera intrinsics K (pinhole-like) with a small per-batch perturbation.
    base_K = jnp.array(
        [[0.58 * W, 0.0, 0.5 * W, 0.0],
         [0.0, 1.92 * H, 0.5 * H, 0.0],
         [0.0, 0.0, 1.0, 0.0],
         [0.0, 0.0, 0.0, 1.0]], jnp.float32)
    K = base_K[None] + 0.01 * jax.random.normal(k3, (B, 4, 4), jnp.float32)

    # Camera extrinsics T: identity plus a small random perturbation.
    T = jnp.eye(4, dtype=jnp.float32)[None] + 0.05 * jax.random.normal(
        k4, (B, 4, 4), jnp.float32)

    out = project3d(points, K, T, height=H, width=W)
    out = jax.block_until_ready(out)

    ref = _reference(points, K, T, height=H, width=W)
    assert out.shape == (B, H, W, 2), out.shape
    # approx-reciprocal + Newton step is accurate to well below this tolerance
    np.testing.assert_allclose(np.asarray(out), np.asarray(ref), rtol=5e-5, atol=5e-5)

    print("KERNEL_OK")
</pallas_src>

<mosaic_0001>
module attributes {stable_mosaic.version = 11 : i64} {
  func.func @_project3d_kernel(%arg0: i32, %arg1: memref<24xf32, #tpu.memory_space<smem>>, %arg2: memref<8x128xf32, #tpu.memory_space<vmem>>, %arg3: memref<4x128xf32, #tpu.memory_space<vmem>>) attributes {dimension_semantics = [#tpu.dimension_semantics<parallel>], iteration_bounds = array<i64: 2>, scalar_prefetch = 0 : i64, scratch_operands = 0 : i64, tpu.core_type = #tpu.core_type<tc>, window_params = [{transform_indices = @transform_0, window_bounds = array<i64: 24>}, {transform_indices = @transform_1, window_bounds = array<i64: 8, 128>}, {transform_indices = @transform_2, window_bounds = array<i64: 4, 128>}]} {
    %c0 = arith.constant 0 : index
    %0 = memref.load %arg1[%c0] : memref<24xf32, #tpu.memory_space<smem>>
    %c0_0 = arith.constant 0 : index
    %c0_1 = arith.constant 0 : index
    %1 = vector.load %arg2[%c0_0, %c0_1] : memref<8x128xf32, #tpu.memory_space<vmem>>, vector<1x128xf32>
    %2 = vector.broadcast %0 : f32 to vector<1x128xf32>
    %3 = arith.mulf %2, %1 : vector<1x128xf32>
    %c1 = arith.constant 1 : index
    %4 = memref.load %arg1[%c1] : memref<24xf32, #tpu.memory_space<smem>>
    %c1_2 = arith.constant 1 : index
    %c0_3 = arith.constant 0 : index
    %5 = vector.load %arg2[%c1_2, %c0_3] : memref<8x128xf32, #tpu.memory_space<vmem>>, vector<1x128xf32>
    %6 = vector.broadcast %4 : f32 to vector<1x128xf32>
    %7 = arith.mulf %6, %5 : vector<1x128xf32>
    %8 = arith.addf %3, %7 : vector<1x128xf32>
    %c2 = arith.constant 2 : index
    %9 = memref.load %arg1[%c2] : memref<24xf32, #tpu.memory_space<smem>>
    %c2_4 = arith.constant 2 : index
    %c0_5 = arith.constant 0 : index
    %10 = vector.load %arg2[%c2_4, %c0_5] : memref<8x128xf32, #tpu.memory_space<vmem>>, vector<1x128xf32>
    %11 = vector.broadcast %9 : f32 to vector<1x128xf32>
    %12 = arith.mulf %11, %10 : vector<1x128xf32>
    %13 = arith.addf %8, %12 : vector<1x128xf32>
    %c3 = arith.constant 3 : index
    %14 = memref.load %arg1[%c3] : memref<24xf32, #tpu.memory_space<smem>>
    %c3_6 = arith.constant 3 : index
    %c0_7 = arith.constant 0 : index
    %15 = vector.load %arg2[%c3_6, %c0_7] : memref<8x128xf32, #tpu.memory_space<vmem>>, vector<1x128xf32>
    %16 = vector.broadcast %14 : f32 to vector<1x128xf32>
    %17 = arith.mulf %16, %15 : vector<1x128xf32>
    %18 = arith.addf %13, %17 : vector<1x128xf32>
    %c4 = arith.constant 4 : index
    %19 = memref.load %arg1[%c4] : memref<24xf32, #tpu.memory_space<smem>>
    %c0_8 = arith.constant 0 : index
    %c0_9 = arith.constant 0 : index
    %20 = vector.load %arg2[%c0_8, %c0_9] : memref<8x128xf32, #tpu.memory_space<vmem>>, vector<1x128xf32>
    %21 = vector.broadcast %19 : f32 to vector<1x128xf32>
    %22 = arith.mulf %21, %20 : vector<1x128xf32>
    %c5 = arith.constant 5 : index
    %23 = memref.load %arg1[%c5] : memref<24xf32, #tpu.memory_space<smem>>
    %c1_10 = arith.constant 1 : index
    %c0_11 = arith.constant 0 : index
    %24 = vector.load %arg2[%c1_10, %c0_11] : memref<8x128xf32, #tpu.memory_space<vmem>>, vector<1x128xf32>
    %25 = vector.broadcast %23 : f32 to vector<1x128xf32>
    %26 = arith.mulf %25, %24 : vector<1x128xf32>
    %27 = arith.addf %22, %26 : vector<1x128xf32>
    %c6 = arith.constant 6 : index
    %28 = memref.load %arg1[%c6] : memref<24xf32, #tpu.memory_space<smem>>
    %c2_12 = arith.constant 2 : index
    %c0_13 = arith.constant 0 : index
    %29 = vector.load %arg2[%c2_12, %c0_13] : memref<8x128xf32, #tpu.memory_space<vmem>>, vector<1x128xf32>
    %30 = vector.broadcast %28 : f32 to vector<1x128xf32>
    %31 = arith.mulf %30, %29 : vector<1x128xf32>
    %32 = arith.addf %27, %31 : vector<1x128xf32>
    %c7 = arith.constant 7 : index
    %33 = memref.load %arg1[%c7] : memref<24xf32, #tpu.memory_space<smem>>
    %c3_14 = arith.constant 3 : index
    %c0_15 = arith.constant 0 : index
    %34 = vector.load %arg2[%c3_14, %c0_15] : memref<8x128xf32, #tpu.memory_space<vmem>>, vector<1x128xf32>
    %35 = vector.broadcast %33 : f32 to vector<1x128xf32>
    %36 = arith.mulf %35, %34 : vector<1x128xf32>
    %37 = arith.addf %32, %36 : vector<1x128xf32>
    %c8 = arith.constant 8 : index
    %38 = memref.load %arg1[%c8] : memref<24xf32, #tpu.memory_space<smem>>
    %c0_16 = arith.constant 0 : index
    %c0_17 = arith.constant 0 : index
    %39 = vector.load %arg2[%c0_16, %c0_17] : memref<8x128xf32, #tpu.memory_space<vmem>>, vector<1x128xf32>
    %40 = vector.broadcast %38 : f32 to vector<1x128xf32>
    %41 = arith.mulf %40, %39 : vector<1x128xf32>
    %c9 = arith.constant 9 : index
    %42 = memref.load %arg1[%c9] : memref<24xf32, #tpu.memory_space<smem>>
    %c1_18 = arith.constant 1 : index
    %c0_19 = arith.constant 0 : index
    %43 = vector.load %arg2[%c1_18, %c0_19] : memref<8x128xf32, #tpu.memory_space<vmem>>, vector<1x128xf32>
    %44 = vector.broadcast %42 : f32 to vector<1x128xf32>
    %45 = arith.mulf %44, %43 : vector<1x128xf32>
    %46 = arith.addf %41, %45 : vector<1x128xf32>
    %c10 = arith.constant 10 : index
    %47 = memref.load %arg1[%c10] : memref<24xf32, #tpu.memory_space<smem>>
    %c2_20 = arith.constant 2 : index
    %c0_21 = arith.constant 0 : index
    %48 = vector.load %arg2[%c2_20, %c0_21] : memref<8x128xf32, #tpu.memory_space<vmem>>, vector<1x128xf32>
    %49 = vector.broadcast %47 : f32 to vector<1x128xf32>
    %50 = arith.mulf %49, %48 : vector<1x128xf32>
    %51 = arith.addf %46, %50 : vector<1x128xf32>
    %c11 = arith.constant 11 : index
    %52 = memref.load %arg1[%c11] : memref<24xf32, #tpu.memory_space<smem>>
    %c3_22 = arith.constant 3 : index
    %c0_23 = arith.constant 0 : index
    %53 = vector.load %arg2[%c3_22, %c0_23] : memref<8x128xf32, #tpu.memory_space<vmem>>, vector<1x128xf32>
    %54 = vector.broadcast %52 : f32 to vector<1x128xf32>
    %55 = arith.mulf %54, %53 : vector<1x128xf32>
    %56 = arith.addf %51, %55 : vector<1x128xf32>
    %cst = arith.constant 1.000000e-07 : f32
    %57 = vector.broadcast %cst : f32 to vector<1x128xf32>
    %58 = arith.addf %56, %57 : vector<1x128xf32>
    %59 = tpu.reciprocal %58 {approx = true} : vector<1x128xf32> -> vector<1x128xf32>
    %60 = arith.mulf %58, %59 : vector<1x128xf32>
    %cst_24 = arith.constant 2.000000e+00 : f32
    %61 = vector.broadcast %cst_24 : f32 to vector<1x128xf32>
    %62 = arith.subf %61, %60 : vector<1x128xf32>
    %63 = arith.mulf %59, %62 : vector<1x128xf32>
    %64 = arith.mulf %18, %63 : vector<1x128xf32>
    %cst_25 = arith.constant 0.13333334 : f32
    %65 = vector.broadcast %cst_25 : f32 to vector<1x128xf32>
    %66 = arith.mulf %64, %65 : vector<1x128xf32>
    %cst_26 = arith.constant 1.000000e+00 : f32
    %67 = vector.broadcast %cst_26 : f32 to vector<1x128xf32>
    %68 = arith.subf %66, %67 : vector<1x128xf32>
    %c0_27 = arith.constant 0 : index
    %c0_28 = arith.constant 0 : index
    %69 = vector.load %arg3[%c0_27, %c0_28] : memref<4x128xf32, #tpu.memory_space<vmem>>, vector<1x128xf32>
    tpu.vector_store %arg3[%c0_27, %c0_28], %68 {strides = array<i32>} : memref<4x128xf32, #tpu.memory_space<vmem>>, vector<1x128xf32>,
    %70 = arith.mulf %37, %63 : vector<1x128xf32>
    %cst_29 = arith.constant 0.13333334 : f32
    %71 = vector.broadcast %cst_29 : f32 to vector<1x128xf32>
    %72 = arith.mulf %70, %71 : vector<1x128xf32>
    %cst_30 = arith.constant 1.000000e+00 : f32
    %73 = vector.broadcast %cst_30 : f32 to vector<1x128xf32>
    %74 = arith.subf %72, %73 : vector<1x128xf32>
    %c1_31 = arith.constant 1 : index
    %c0_32 = arith.constant 0 : index
    %75 = vector.load %arg3[%c1_31, %c0_32] : memref<4x128xf32, #tpu.memory_space<vmem>>, vector<1x128xf32>
    tpu.vector_store %arg3[%c1_31, %c0_32], %74 {strides = array<i32>} : memref<4x128xf32, #tpu.memory_space<vmem>>, vector<1x128xf32>,
    %c12 = arith.constant 12 : index
    %76 = memref.load %arg1[%c12] : memref<24xf32, #tpu.memory_space<smem>>
    %c4_33 = arith.constant 4 : index
    %c0_34 = arith.constant 0 : index
    %77 = vector.load %arg2[%c4_33, %c0_34] : memref<8x128xf32, #tpu.memory_space<vmem>>, vector<1x128xf32>
    %78 = vector.broadcast %76 : f32 to vector<1x128xf32>
    %79 = arith.mulf %78, %77 : vector<1x128xf32>
    %c13 = arith.constant 13 : index
    %80 = memref.load %arg1[%c13] : memref<24xf32, #tpu.memory_space<smem>>
    %c5_35 = arith.constant 5 : index
    %c0_36 = arith.constant 0 : index
    %81 = vector.load %arg2[%c5_35, %c0_36] : memref<8x128xf32, #tpu.memory_space<vmem>>, vector<1x128xf32>
    %82 = vector.broadcast %80 : f32 to vector<1x128xf32>
    %83 = arith.mulf %82, %81 : vector<1x128xf32>
    %84 = arith.addf %79, %83 : vector<1x128xf32>
    %c14 = arith.constant 14 : index
    %85 = memref.load %arg1[%c14] : memref<24xf32, #tpu.memory_space<smem>>
    %c6_37 = arith.constant 6 : index
    %c0_38 = arith.constant 0 : index
    %86 = vector.load %arg2[%c6_37, %c0_38] : memref<8x128xf32, #tpu.memory_space<vmem>>, vector<1x128xf32>
    %87 = vector.broadcast %85 : f32 to vector<1x128xf32>
    %88 = arith.mulf %87, %86 : vector<1x128xf32>
    %89 = arith.addf %84, %88 : vector<1x128xf32>
    %c15 = arith.constant 15 : index
    %90 = memref.load %arg1[%c15] : memref<24xf32, #tpu.memory_space<smem>>
    %c7_39 = arith.constant 7 : index
    %c0_40 = arith.constant 0 : index
    %91 = vector.load %arg2[%c7_39, %c0_40] : memref<8x128xf32, #tpu.memory_space<vmem>>, vector<1x128xf32>
    %92 = vector.broadcast %90 : f32 to vector<1x128xf32>
    %93 = arith.mulf %92, %91 : vector<1x128xf32>
    %94 = arith.addf %89, %93 : vector<1x128xf32>
    %c16 = arith.constant 16 : index
    %95 = memref.load %arg1[%c16] : memref<24xf32, #tpu.memory_space<smem>>
    %c4_41 = arith.constant 4 : index
    %c0_42 = arith.constant 0 : index
    %96 = vector.load %arg2[%c4_41, %c0_42] : memref<8x128xf32, #tpu.memory_space<vmem>>, vector<1x128xf32>
    %97 = vector.broadcast %95 : f32 to vector<1x128xf32>
    %98 = arith.mulf %97, %96 : vector<1x128xf32>
    %c17 = arith.constant 17 : index
    %99 = memref.load %arg1[%c17] : memref<24xf32, #tpu.memory_space<smem>>
    %c5_43 = arith.constant 5 : index
    %c0_44 = arith.constant 0 : index
    %100 = vector.load %arg2[%c5_43, %c0_44] : memref<8x128xf32, #tpu.memory_space<vmem>>, vector<1x128xf32>
    %101 = vector.broadcast %99 : f32 to vector<1x128xf32>
    %102 = arith.mulf %101, %100 : vector<1x128xf32>
    %103 = arith.addf %98, %102 : vector<1x128xf32>
    %c18 = arith.constant 18 : index
    %104 = memref.load %arg1[%c18] : memref<24xf32, #tpu.memory_space<smem>>
    %c6_45 = arith.constant 6 : index
    %c0_46 = arith.constant 0 : index
    %105 = vector.load %arg2[%c6_45, %c0_46] : memref<8x128xf32, #tpu.memory_space<vmem>>, vector<1x128xf32>
    %106 = vector.broadcast %104 : f32 to vector<1x128xf32>
    %107 = arith.mulf %106, %105 : vector<1x128xf32>
    %108 = arith.addf %103, %107 : vector<1x128xf32>
    %c19 = arith.constant 19 : index
    %109 = memref.load %arg1[%c19] : memref<24xf32, #tpu.memory_space<smem>>
    %c7_47 = arith.constant 7 : index
    %c0_48 = arith.constant 0 : index
    %110 = vector.load %arg2[%c7_47, %c0_48] : memref<8x128xf32, #tpu.memory_space<vmem>>, vector<1x128xf32>
    %111 = vector.broadcast %109 : f32 to vector<1x128xf32>
    %112 = arith.mulf %111, %110 : vector<1x128xf32>
    %113 = arith.addf %108, %112 : vector<1x128xf32>
    %c20 = arith.constant 20 : index
    %114 = memref.load %arg1[%c20] : memref<24xf32, #tpu.memory_space<smem>>
    %c4_49 = arith.constant 4 : index
    %c0_50 = arith.constant 0 : index
    %115 = vector.load %arg2[%c4_49, %c0_50] : memref<8x128xf32, #tpu.memory_space<vmem>>, vector<1x128xf32>
    %116 = vector.broadcast %114 : f32 to vector<1x128xf32>
    %117 = arith.mulf %116, %115 : vector<1x128xf32>
    %c21 = arith.constant 21 : index
    %118 = memref.load %arg1[%c21] : memref<24xf32, #tpu.memory_space<smem>>
    %c5_51 = arith.constant 5 : index
    %c0_52 = arith.constant 0 : index
    %119 = vector.load %arg2[%c5_51, %c0_52] : memref<8x128xf32, #tpu.memory_space<vmem>>, vector<1x128xf32>
    %120 = vector.broadcast %118 : f32 to vector<1x128xf32>
    %121 = arith.mulf %120, %119 : vector<1x128xf32>
    %122 = arith.addf %117, %121 : vector<1x128xf32>
    %c22 = arith.constant 22 : index
    %123 = memref.load %arg1[%c22] : memref<24xf32, #tpu.memory_space<smem>>
    %c6_53 = arith.constant 6 : index
    %c0_54 = arith.constant 0 : index
    %124 = vector.load %arg2[%c6_53, %c0_54] : memref<8x128xf32, #tpu.memory_space<vmem>>, vector<1x128xf32>
    %125 = vector.broadcast %123 : f32 to vector<1x128xf32>
    %126 = arith.mulf %125, %124 : vector<1x128xf32>
    %127 = arith.addf %122, %126 : vector<1x128xf32>
    %c23 = arith.constant 23 : index
    %128 = memref.load %arg1[%c23] : memref<24xf32, #tpu.memory_space<smem>>
    %c7_55 = arith.constant 7 : index
    %c0_56 = arith.constant 0 : index
    %129 = vector.load %arg2[%c7_55, %c0_56] : memref<8x128xf32, #tpu.memory_space<vmem>>, vector<1x128xf32>
    %130 = vector.broadcast %128 : f32 to vector<1x128xf32>
    %131 = arith.mulf %130, %129 : vector<1x128xf32>
    %132 = arith.addf %127, %131 : vector<1x128xf32>
    %cst_57 = arith.constant 1.000000e-07 : f32
    %133 = vector.broadcast %cst_57 : f32 to vector<1x128xf32>
    %134 = arith.addf %132, %133 : vector<1x128xf32>
    %135 = tpu.reciprocal %134 {approx = true} : vector<1x128xf32> -> vector<1x128xf32>
    %136 = arith.mulf %134, %135 : vector<1x128xf32>
    %cst_58 = arith.constant 2.000000e+00 : f32
    %137 = vector.broadcast %cst_58 : f32 to vector<1x128xf32>
    %138 = arith.subf %137, %136 : vector<1x128xf32>
    %139 = arith.mulf %135, %138 : vector<1x128xf32>
    %140 = arith.mulf %94, %139 : vector<1x128xf32>
    %cst_59 = arith.constant 0.13333334 : f32
    %141 = vector.broadcast %cst_59 : f32 to vector<1x128xf32>
    %142 = arith.mulf %140, %141 : vector<1x128xf32>
    %cst_60 = arith.constant 1.000000e+00 : f32
    %143 = vector.broadcast %cst_60 : f32 to vector<1x128xf32>
    %144 = arith.subf %142, %143 : vector<1x128xf32>
    %c2_61 = arith.constant 2 : index
    %c0_62 = arith.constant 0 : index
    %145 = vector.load %arg3[%c2_61, %c0_62] : memref<4x128xf32, #tpu.memory_space<vmem>>, vector<1x128xf32>
    tpu.vector_store %arg3[%c2_61, %c0_62], %144 {strides = array<i32>} : memref<4x128xf32, #tpu.memory_space<vmem>>, vector<1x128xf32>,
    %146 = arith.mulf %113, %139 : vector<1x128xf32>
    %cst_63 = arith.constant 0.13333334 : f32
    %147 = vector.broadcast %cst_63 : f32 to vector<1x128xf32>
    %148 = arith.mulf %146, %147 : vector<1x128xf32>
    %cst_64 = arith.constant 1.000000e+00 : f32
    %149 = vector.broadcast %cst_64 : f32 to vector<1x128xf32>
    %150 = arith.subf %148, %149 : vector<1x128xf32>
    %c3_65 = arith.constant 3 : index
    %c0_66 = arith.constant 0 : index
    %151 = vector.load %arg3[%c3_65, %c0_66] : memref<4x128xf32, #tpu.memory_space<vmem>>, vector<1x128xf32>
    tpu.vector_store %arg3[%c3_65, %c0_66], %150 {strides = array<i32>} : memref<4x128xf32, #tpu.memory_space<vmem>>, vector<1x128xf32>,
    return
  }
  func.func @transform_0(%arg0: i32) -> i32 {
    %c0_i32 = arith.constant 0 : i32
    %c0_i32_0 = arith.constant 0 : i32
    return %c0_i32 : i32
  }
  func.func @transform_1(%arg0: i32) -> (i32, i32) {
    %c0_i32 = arith.constant 0 : i32
    %c0_i32_0 = arith.constant 0 : i32
    return %c0_i32, %arg0 : i32, i32
  }
  func.func @transform_2(%arg0: i32) -> (i32, i32) {
    %c0_i32 = arith.constant 0 : i32
    %c0_i32_0 = arith.constant 0 : i32
    return %c0_i32, %arg0 : i32, i32
  }
}

</mosaic_0001>

<llo_original>
// kernel: tpu_custom_call.1
$region0: #{tpu_custom_call.1}
  #allocation0 [shape = 'u32[]', space=smem, size = 0x4, offset = 0x4, fixed_abs, tag = 'smem constant byte address 0x4 - core index']
  #allocation1 [shape = 'u32[144,128]{1,0:T(1,128)}', space=vmem, size = 0x12000, scoped, tag = 'internal scratch']
  %s0 = inlined_call_operand.hbm [shape: f32[24], index: 0, kind: input, shape index: {}]
  %s1 = inlined_call_operand.hbm [shape: f32[8,256], index: 1, kind: input, shape index: {}]
  %s2 = inlined_call_operand.hbm [shape: f32[4,256], index: 2, kind: output, shape index: {}]
  %s3 = sld [smem:[#allocation0]]
  $region49: #{tpu_custom_call.1} parent=0
    _
  %s5 = ssub.s32 1, %s3
  %s6 = scalar_select 0, %s5, %s3
  $region1: #{tpu_custom_call.1} parent=0
    #allocation2 [shape = 'u8[512]{0}', space=smem, size = 0x200, scoped, tag = 'input window, operand 0, single buffered']
    #allocation3 [shape = 's32[2]{0}', space=sflag, size = 0x8, scoped, tag = 'scoped memory for tpu_custom_call.1']
    #allocation4 [shape = 's32[2]{0}', space=sflag, size = 0x8, scoped, tag = 'scoped memory for tpu_custom_call.1']
    #allocation5 [shape = 's32[2]{0}', space=sflag, size = 0x8, scoped, tag = 'scoped memory for tpu_custom_call.1']
    #allocation6 [shape = 'u8[8192]{0}', space=vmem, size = 0x2000, scoped, tag = 'input window, operand 1']
    #allocation7 [shape = 'u8[4096]{0}', space=vmem, size = 0x1000, scoped, tag = 'output window, operand 0']
    %7 = vsyncpa [#allocation5], 0
    %8 = vsyncpa [#allocation3], 0
    %s9 = scalar_lea.sflag [#allocation3], 1
    %10 = vsyncpa %s9, 0
    %11 = vsyncpa [#allocation4], 0
    %s12 = scalar_lea.sflag [#allocation4], 1
    %13 = vsyncpa %s12, 0
    loop: start=0, step=1, limit=4
    $region2: #{tpu_custom_call.1} parent=1 // loop_pre_header
      _
    $region3: #{tpu_custom_call.1} parent=1 // loop_header
      %s15 = sphi 0, %s19
      %p16 = scmp.ge.s32.totalorder %s15, 4
      %s23 = sphi 0, %s23
      %s25 = sphi 0, %s23
      %s26 = sphi 0, %s25
      %s40 = sphi 0, %s26
      %s46 = sphi 0, %s48
      %s49 = sphi 0, %s46
      %s50 = sphi 0, %s49
      %s66 = sphi 0, %s50
      %s72 = sphi 0, %s74
      %s75 = sphi 0, %s72
      %s76 = sphi 0, %s75
      %s92 = sphi 0, %s76
    $region4: #{tpu_custom_call.1} parent=1 // loop_header_branch
      %18 = sbr.rel (%p16) target = $region8
    $region5: #{tpu_custom_call.1} parent=1 // loop_body
      %s20 = ssub.s32 %s15, 1
      %s21 = ssub.s32 %s15, 2
      %s22 = sadd.s32 %s15, 1
      %s24 = sadd.s32 %s23, 1
      %p27 = scmp.eq.s32.totalorder %s15, 1
      %p28 = scmp.ne.s32.totalorder %s23, %s25
      %p29 = scmp.eq.s32.totalorder %s15, 0
      %p30 = por %p28, %p29
      %p31 = scmp.ne.s32.totalorder %s23, %s25
      %p32 = scmp.eq.s32.totalorder %s20, 1
      %p33 = por %p31, %p32
      %p34 = scmp.ne.s32.totalorder %s25, %s26
      %p35 = scmp.eq.s32.totalorder %s20, 0
      %p36 = por %p34, %p35
      %p37 = scmp.ne.s32.totalorder %s25, %s26
      %p38 = scmp.eq.s32.totalorder %s21, 1
      %p39 = por %p37, %p38
      %p41 = scmp.ne.s32.totalorder %s26, %s40
      %p42 = scmp.eq.s32.totalorder %s21, 0
      %p43 = por %p41, %p42
      %s44 = ssub.s32 %s15, %s22
      %p45 = scmp.eq.s32.totalorder %s44, 0
      %s47 = sadd.s32 %s46, 1
      %s48 = scalar_select %p45, %s46, %s47
      %p51 = pneg %p45
      %p52 = scmp.eq.s32.totalorder %s15, 1
      %p53 = por %p51, %p52
      %p54 = scmp.ne.s32.totalorder %s46, %s49
      %p55 = scmp.eq.s32.totalorder %s15, 0
      %p56 = por %p54, %p55
      %p57 = scmp.ne.s32.totalorder %s46, %s49
      %p58 = scmp.eq.s32.totalorder %s20, 1
      %p59 = por %p57, %p58
      %p60 = scmp.ne.s32.totalorder %s49, %s50
      %p61 = scmp.eq.s32.totalorder %s20, 0
      %p62 = por %p60, %p61
      %p63 = scmp.ne.s32.totalorder %s49, %s50
      %p64 = scmp.eq.s32.totalorder %s21, 1
      %p65 = por %p63, %p64
      %p67 = scmp.ne.s32.totalorder %s50, %s66
      %p68 = scmp.eq.s32.totalorder %s21, 0
      %p69 = por %p67, %p68
      %s70 = ssub.s32 %s15, %s22
      %p71 = scmp.eq.s32.totalorder %s70, 0
      %s73 = sadd.s32 %s72, 1
      %s74 = scalar_select %p71, %s72, %s73
      %p77 = pneg %p71
      %p78 = scmp.eq.s32.totalorder %s15, 1
      %p79 = por %p77, %p78
      %p80 = scmp.ne.s32.totalorder %s72, %s75
      %p81 = scmp.eq.s32.totalorder %s15, 0
      %p82 = por %p80, %p81
      %p83 = scmp.ne.s32.totalorder %s72, %s75
      %p84 = scmp.eq.s32.totalorder %s20, 1
      %p85 = por %p83, %p84
      %p86 = scmp.ne.s32.totalorder %s75, %s76
      %p87 = scmp.eq.s32.totalorder %s20, 0
      %p88 = por %p86, %p87
      %p89 = scmp.ne.s32.totalorder %s75, %s76
      %p90 = scmp.eq.s32.totalorder %s21, 1
      %p91 = por %p89, %p90
      %p93 = scmp.ne.s32.totalorder %s76, %s92
      %p94 = scmp.eq.s32.totalorder %s21, 0
      %p95 = por %p93, %p94
      %p96 = scmp.le.s32.totalorder 1, %s15
      %p97 = scmp.lt.s32.totalorder %s15, 3
      %p98 = pnand %p96, %p97
      %p99 = pneg %p98
      // Predicated region
      $region9: #{tpu_custom_call.1} parent=5 // pred_check
        _
      $region10: #{tpu_custom_call.1} parent=5 // pred_check_branch
        %101 = sbr.rel (%p98) target = $region12
      $region11: #{tpu_custom_call.1} parent=5 // pred_region
        %s102 = ssub.s32 %s15, 1
        // Predicated region
        $region13: #{tpu_custom_call.1} parent=11 // pred_check
          %p103 = pneg %p36
        $region14: #{tpu_custom_call.1} parent=11 // pred_check_branch
          %105 = sbr.rel (%p103) target = $region16
        $region15: #{tpu_custom_call.1} parent=11 // pred_region
          %s107 = ssub.s32 16, 16
          %108 = vsyncadd [#allocation5], %s107
          %111 = dma.hbm_to_smem %s0, 16, [#allocation2], [#allocation5]
        $region16: #{tpu_custom_call.1} parent=11 // pred_fallthru
          _
      $region12: #{tpu_custom_call.1} parent=5 // pred_fallthru
        _
      %p112 = scmp.lt.s32.totalorder %s15, 2
      // Predicated region
      $region17: #{tpu_custom_call.1} parent=5 // pred_check
        %p113 = pneg %p112
      $region18: #{tpu_custom_call.1} parent=5 // pred_check_branch
        %115 = sbr.rel (%p113) target = $region20
      $region19: #{tpu_custom_call.1} parent=5 // pred_region
        // Predicated region
        $region21: #{tpu_custom_call.1} parent=19 // pred_check
          %p116 = pneg %p56
        $region22: #{tpu_custom_call.1} parent=19 // pred_check_branch
          %118 = sbr.rel (%p116) target = $region24
        $region23: #{tpu_custom_call.1} parent=19 // pred_region
          %s119 = sand.u32 %s46, 1
          %s120 = scalar_lea.sflag [#allocation3], %s119
          %s121 = sand.u32 %s46, 1
          %s122 = smul.addr %s121, 8
          %s123 = scalar_lea.vmem [#allocation6], %s122
          %s125 = ssub.s32 128, 128
          %126 = vsyncadd %s120, %s125
          %s127 = smul.addr %s15, 128
          %s128 = scalar_lea.hbm %s1, %s127
          %s130 = sshll.u32 %s123, 4
          %s131 = int_to_ptr.vmem [resolvable:$true] %s130
          %133 = dma.hbm_to_vmem [thread:$0]  %s128, 128, %s131, %s120
        $region24: #{tpu_custom_call.1} parent=19 // pred_fallthru
          _
      $region20: #{tpu_custom_call.1} parent=5 // pred_fallthru
        _
      %p134 = scmp.le.s32.totalorder 1, %s15
      %p135 = scmp.lt.s32.totalorder %s15, 3
      %p136 = pnand %p134, %p135
      %p137 = pneg %p136
      // Predicated region
      $region25: #{tpu_custom_call.1} parent=5 // pred_check
        _
      $region26: #{tpu_custom_call.1} parent=5 // pred_check_branch
        %139 = sbr.rel (%p136) target = $region28
      $region27: #{tpu_custom_call.1} parent=5 // pred_region
        %s140 = ssub.s32 %s15, 1
        // Predicated region
        $region29: #{tpu_custom_call.1} parent=27 // pred_check
          %p141 = pneg %p36
        $region30: #{tpu_custom_call.1} parent=27 // pred_check_branch
          %143 = sbr.rel (%p141) target = $region32
        $region31: #{tpu_custom_call.1} parent=27 // pred_region
          %144 = dma.done [#allocation5], 16
        $region32: #{tpu_custom_call.1} parent=27 // pred_fallthru
          _
        %s145 = sand.u32 %s49, 1
        %s146 = scalar_lea.sflag [#allocation3], %s145
        %s147 = sand.u32 %s49, 1
        %s148 = smul.addr %s147, 8
        %s149 = scalar_lea.vmem [#allocation6], %s148
        // Predicated region
        $region33: #{tpu_custom_call.1} parent=27 // pred_check
          %p150 = pneg %p62
        $region34: #{tpu_custom_call.1} parent=27 // pred_check_branch
          %152 = sbr.rel (%p150) target = $region36
        $region35: #{tpu_custom_call.1} parent=27 // pred_region
          %153 = dma.done %s146, 128
        $region36: #{tpu_custom_call.1} parent=27 // pred_fallthru
          _
        %154 = sfence
        %p155 = pneg %p36
        %p156 = pneg %p33
        %s157 = sand.u32 %s49, 1
        %s158 = scalar_lea.sflag [#allocation3], %s157
        %s159 = sand.u32 %s49, 1
        %s160 = smul.addr %s159, 8
        %s161 = scalar_lea.vmem [#allocation6], %s160
        %p162 = pneg %p62
        %p163 = pneg %p59
        %p164 = pneg %p88
        %p165 = pneg %p85
        %s166 = sand.u32 %s75, 1
        %s167 = scalar_lea.sflag [#allocation4], %s166
        %s168 = sand.u32 %s75, 1
        %s169 = smul.addr %s168, 4
        %s170 = scalar_lea.vmem [#allocation7], %s169
        %s171 = sld [smem:[#allocation2]]
        %v172 = vld [vmem:[%s149] sm:$0x1]
        %v173 = vstv %s171
        %v174 = vmul.f32 %v173, %v172
        %s175 = sld [smem:[#allocation2 + $0x1]]
        %v176 = vld [vmem:[%s149 + $0x1] sm:$0x1]
        %v177 = vstv %s175
        %v178 = vmul.f32 %v177, %v176
        %v179 = vadd.f32 %v174, %v178
        %s180 = sld [smem:[#allocation2 + $0x2]]
        %v181 = vld [vmem:[%s149 + $0x2] sm:$0x1]
        %v182 = vstv %s180
        %v183 = vmul.f32 %v182, %v181
        %v184 = vadd.f32 %v179, %v183
        %s185 = sld [smem:[#allocation2 + $0x3]]
        %v186 = vld [vmem:[%s149 + $0x3] sm:$0x1]
        %v187 = vstv %s185
        %v188 = vmul.f32 %v187, %v186
        %v189 = vadd.f32 %v184, %v188
        %s190 = sld [smem:[#allocation2 + $0x4]]
        %v191 = vstv %s190
        %v192 = vmul.f32 %v191, %v172
        %s193 = sld [smem:[#allocation2 + $0x5]]
        %v194 = vstv %s193
        %v195 = vmul.f32 %v194, %v176
        %v196 = vadd.f32 %v192, %v195
        %s197 = sld [smem:[#allocation2 + $0x6]]
        %v198 = vstv %s197
        %v199 = vmul.f32 %v198, %v181
        %v200 = vadd.f32 %v196, %v199
        %s201 = sld [smem:[#allocation2 + $0x7]]
        %v202 = vstv %s201
        %v203 = vmul.f32 %v202, %v186
        %v204 = vadd.f32 %v200, %v203
        %s205 = sld [smem:[#allocation2 + $0x8]]
        %v206 = vstv %s205
        %v207 = vmul.f32 %v206, %v172
        %s208 = sld [smem:[#allocation2 + $0x9]]
        %v209 = vstv %s208
        %v210 = vmul.f32 %v209, %v176
        %v211 = vadd.f32 %v207, %v210
        %s212 = sld [smem:[#allocation2 + $0xa]]
        %v213 = vstv %s212
        %v214 = vmul.f32 %v213, %v181
        %v215 = vadd.f32 %v211, %v214
        %s216 = sld [smem:[#allocation2 + $0xb]]
        %v217 = vstv %s216
        %v218 = vmul.f32 %v217, %v186
        %v219 = vadd.f32 %v215, %v218
        %v220 = vadd.f32 %v219, 1e-07
        %v221 = vrcp.pop %v220
        %v222 = vmul.f32 %v220, %v221
        %v223 = vsub.f32 2.0, %v222
        %v224 = vmul.f32 %v221, %v223
        %v225 = vmul.f32 %v189, %v224
        %v226 = vmul.f32 %v225, 0.13333334
        %v227 = vsub.f32 %v226, 1.0
        %228 = vst [vmem:[%s170] sm:$0x1] %v227
        %v229 = vmul.f32 %v204, %v224
        %v230 = vmul.f32 %v229, 0.13333334
        %v231 = vsub.f32 %v230, 1.0
        %232 = vst [vmem:[%s170 + $0x1] sm:$0x1] %v231
        %s233 = sld [smem:[#allocation2 + $0xc]]
        %v234 = vld [vmem:[%s149 + $0x4] sm:$0x1]
        %v235 = vstv %s233
        %v236 = vmul.f32 %v235, %v234
        %s237 = sld [smem:[#allocation2 + $0xd]]
        %v238 = vld [vmem:[%s149 + $0x5] sm:$0x1]
        %v239 = vstv %s237
        %v240 = vmul.f32 %v239, %v238
        %v241 = vadd.f32 %v236, %v240
        %s242 = sld [smem:[#allocation2 + $0xe]]
        %v243 = vld [vmem:[%s149 + $0x6] sm:$0x1]
        %v244 = vstv %s242
        %v245 = vmul.f32 %v244, %v243
        %v246 = vadd.f32 %v241, %v245
        %s247 = sld [smem:[#allocation2 + $0xf]]
        %v248 = vld [vmem:[%s149 + $0x7] sm:$0x1]
        %v249 = vstv %s247
        %v250 = vmul.f32 %v249, %v248
        %v251 = vadd.f32 %v246, %v250
        %s252 = sld [smem:[#allocation2 + $0x10]]
        %v253 = vstv %s252
        %v254 = vmul.f32 %v253, %v234
        %s255 = sld [smem:[#allocation2 + $0x11]]
        %v256 = vstv %s255
        %v257 = vmul.f32 %v256, %v238
        %v258 = vadd.f32 %v254, %v257
        %s259 = sld [smem:[#allocation2 + $0x12]]
        %v260 = vstv %s259
        %v261 = vmul.f32 %v260, %v243
        %v262 = vadd.f32 %v258, %v261
        %s263 = sld [smem:[#allocation2 + $0x13]]
        %v264 = vstv %s263
        %v265 = vmul.f32 %v264, %v248
        %v266 = vadd.f32 %v262, %v265
        %s267 = sld [smem:[#allocation2 + $0x14]]
        %v268 = vstv %s267
        %v269 = vmul.f32 %v268, %v234
        %s270 = sld [smem:[#allocation2 + $0x15]]
        %v271 = vstv %s270
        %v272 = vmul.f32 %v271, %v238
        %v273 = vadd.f32 %v269, %v272
        %s274 = sld [smem:[#allocation2 + $0x16]]
        %v275 = vstv %s274
        %v276 = vmul.f32 %v275, %v243
        %v277 = vadd.f32 %v273, %v276
        %s278 = sld [smem:[#allocation2 + $0x17]]
        %v279 = vstv %s278
        %v280 = vmul.f32 %v279, %v248
        %v281 = vadd.f32 %v277, %v280
        %v282 = vadd.f32 %v281, 1e-07
        %v283 = vrcp.pop %v282
        %v284 = vmul.f32 %v282, %v283
        %v285 = vsub.f32 2.0, %v284
        %v286 = vmul.f32 %v283, %v285
        %v287 = vmul.f32 %v251, %v286
        %v288 = vmul.f32 %v287, 0.13333334
        %v289 = vsub.f32 %v288, 1.0
        %290 = vst [vmem:[%s170 + $0x2] sm:$0x1] %v289
        %v291 = vmul.f32 %v266, %v286
        %v292 = vmul.f32 %v291, 0.13333334
        %v293 = vsub.f32 %v292, 1.0
        %294 = vst [vmem:[%s170 + $0x3] sm:$0x1] %v293
        %s295 = sand.u32 %s75, 1
        %s296 = scalar_lea.sflag [#allocation4], %s295
        %s297 = sand.u32 %s75, 1
        %s298 = smul.addr %s297, 4
        %s299 = scalar_lea.vmem [#allocation7], %s298
        // Predicated region
        $region37: #{tpu_custom_call.1} parent=27 // pred_check
          %p300 = pneg %p85
        $region38: #{tpu_custom_call.1} parent=27 // pred_check_branch
          %302 = sbr.rel (%p300) target = $region40
        $region39: #{tpu_custom_call.1} parent=27 // pred_region
          %s304 = ssub.s32 64, 64
          %305 = vsyncadd %s296, %s304
          %s306 = smul.addr %s20, 64
          %s307 = scalar_lea.hbm %s2, %s306
          %s309 = sshll.u32 %s299, 4
          %s310 = int_to_ptr.vmem [resolvable:$true] %s309
          %312 = dma.vmem_to_hbm [thread:$0]  %s310, 64, %s307, %s296
        $region40: #{tpu_custom_call.1} parent=27 // pred_fallthru
          _
      $region28: #{tpu_custom_call.1} parent=5 // pred_fallthru
        _
      %p313 = scmp.le.s32.totalorder 2, %s15
      // Predicated region
      $region41: #{tpu_custom_call.1} parent=5 // pred_check
        %p314 = pneg %p313
      $region42: #{tpu_custom_call.1} parent=5 // pred_check_branch
        %316 = sbr.rel (%p314) target = $region44
      $region43: #{tpu_custom_call.1} parent=5 // pred_region
        %s317 = ssub.s32 %s15, 2
        // Predicated region
        $region45: #{tpu_custom_call.1} parent=43 // pred_check
          %p318 = pneg %p91
        $region46: #{tpu_custom_call.1} parent=43 // pred_check_branch
          %320 = sbr.rel (%p318) target = $region48
        $region47: #{tpu_custom_call.1} parent=43 // pred_region
          %s321 = sand.u32 %s76, 1
          %s322 = scalar_lea.sflag [#allocation4], %s321
          %s323 = sand.u32 %s76, 1
          %s324 = smul.addr %s323, 4
          %s325 = scalar_lea.vmem [#allocation7], %s324
          %326 = dma.done %s322, 64
        $region48: #{tpu_custom_call.1} parent=43 // pred_fallthru
          _
      $region44: #{tpu_custom_call.1} parent=5 // pred_fallthru
        _
    $region6: #{tpu_custom_call.1} parent=1 // loop_footer
      %s19 = sadd.s32 1, %s15
    $region7: #{tpu_custom_call.1} parent=1 // loop_footer_branch
      %14 = sbr.rel target = $region3
    $region8: #{tpu_custom_call.1} parent=1 // loop_exit
      _
    %327 = vsyncpa [#allocation3], 1
    %s328 = scalar_lea.sflag [#allocation3], 1
    %329 = vsyncpa %s328, 1
    %330 = vsyncpa [#allocation4], 1
    %s331 = scalar_lea.sflag [#allocation4], 1
    %332 = vsyncpa %s331, 1
    %333 = vsyncpa [#allocation5], 1
    %s334 = scalar_lea.sflag [#allocation5], 1
    %335 = vsyncpa %s334, 1

</llo_original>
